<compile_context>
chip_gen: v5e
topology: v5e:2x2
jax: 0.10.0
libtpu: 0.0.40
codegen_flags: <defaults>
</compile_context>

<pallas_src>
import functools
import math

import jax
import jax.numpy as jnp
from jax.experimental import pallas as pl
from jax.experimental.pallas import tpu as pltpu


# ------------------------------ linear kernel --------------------------------

def _linear_kernel(x_ref, wt_ref, b_ref, o_ref):
    acc = jnp.dot(x_ref[...], wt_ref[...], preferred_element_type=jnp.float32)
    o_ref[...] = (acc + b_ref[...]).astype(o_ref.dtype)


def pallas_linear(x, w, b, *, row_tile=512):
    """y = x @ w.T + b, row-tiled.  x: (N, Din), w: (Dout, Din), b: (Dout,)."""
    N, Din = x.shape
    Dout = w.shape[0]
    wt = w.T                       # host-side layout plumbing only
    b2 = b.reshape(1, Dout)
    tr = N if N <= row_tile else row_tile     # multiple of 8, or the full dim
    # TODO(synk): add a K-accumulation grid axis if Din ever outgrows VMEM.
    return pl.pallas_call(
        _linear_kernel,
        out_shape=jax.ShapeDtypeStruct((N, Dout), x.dtype),
        grid_spec=pltpu.PrefetchScalarGridSpec(
            num_scalar_prefetch=0,
            grid=(pl.cdiv(N, tr),),
            in_specs=[pl.BlockSpec((tr, Din), lambda i: (i, 0)),
                      pl.BlockSpec((Din, Dout), lambda i: (0, 0)),   # resident
                      pl.BlockSpec((1, Dout), lambda i: (0, 0))],    # resident
            out_specs=pl.BlockSpec((tr, Dout), lambda i: (i, 0))),
        compiler_params=pltpu.CompilerParams(
            dimension_semantics=("parallel",)),
    )(x, wt, b2)


# ------------------------- chunked linear attention --------------------------

def _ortho_attn_kernel(mask_ref, qkv_ref, o_ref, kv_state, kn_state,
                       *, n_heads, d_head, d_model):
    """One (batch b, seq-tile i) step of chunked causal linear attention.

    mask_ref : (Tq, Tq) f32 lower-triangular (mask[t, s] = 1 iff s <= t); resident.
    qkv_ref  : (1, Tq, 3*d_model) fused Q|K|V projections for batch b, tile i.
    o_ref    : (1, Tq, d_model) output block (lane-dense full-width store).
    kv_state : VMEM (H, Dh, Dh) running sum_{s < tile} k_s^T v_s per head.
    kn_state : VMEM (H, 1, Dh)  running sum_{s < tile} k_s     per head.
    """
    i = pl.program_id(1)

    @pl.when(i == 0)
    def _():
        kv_state[...] = jnp.zeros_like(kv_state)
        kn_state[...] = jnp.zeros_like(kn_state)

    f32 = jnp.float32
    qkv = qkv_ref[0].astype(f32)          # (Tq, 3*Dm)
    mask = mask_ref[...]                  # (Tq, Tq)

    contract_last = (((1,), (1,)), ((), ()))
    outs = []
    for h in range(n_heads):
        lo = h * d_head
        q = qkv[:, lo:lo + d_head]
        k = qkv[:, d_model + lo:d_model + lo + d_head]
        v = qkv[:, 2 * d_model + lo:2 * d_model + lo + d_head]

        # per-position softmax over the head dim (exp(beta) already folded into W_q/W_k)
        q = jax.nn.softmax(q, axis=-1)
        k = jax.nn.softmax(k, axis=-1)

        kv_prev = kv_state[h]             # (Dh, Dh)
        kn_prev = kn_state[h]             # (1, Dh)

        # within-tile causal contribution (only (Tq, Tq) ever materialized)
        scores = jax.lax.dot_general(q, k, contract_last,
                                     preferred_element_type=f32) * mask    # (Tq, Tq)

        num = (jnp.dot(scores, v, preferred_element_type=f32)
               + jnp.dot(q, kv_prev, preferred_element_type=f32))          # (Tq, Dh)
        den = (jnp.sum(scores, axis=-1, keepdims=True)
               + jnp.sum(q * kn_prev, axis=-1, keepdims=True))             # (Tq, 1)

        # EUP approx reciprocal + one Newton step (full f32 accuracy, no VALU divide)
        inv = pl.reciprocal(den, approx=True)
        inv = inv * (2.0 - den * inv)
        outs.append(num * inv)

        # carry the state forward (use-then-update)
        kv_state[h] = kv_prev + jax.lax.dot_general(
            k, v, (((0,), (0,)), ((), ())), preferred_element_type=f32)    # k^T v
        kn_state[h] = kn_prev + jnp.sum(k, axis=0, keepdims=True)

    o_ref[0] = jnp.concatenate(outs, axis=-1).astype(o_ref.dtype)


def _choose_seq_tile(s, target=256):
    """Largest tile <= target that divides s and is a multiple of 8 (else s)."""
    if s <= target:
        return s
    for t in range(target, 0, -8):
        if s % t == 0:
            return t
    return s


# --------------------------------- wrapper -----------------------------------

def ortho_linear_attention(x, params, n_heads, *, seq_tile=256, row_tile=512):
    """x: (S, B, d_model) -> (B, S, d_model); causal path of the PyTorch module."""
    S, B, Dm = x.shape
    H = n_heads
    Dh = Dm // H

    # fold exp(beta) per head into the q/k projections (exact)
    scale = jnp.repeat(jnp.exp(params['beta']), Dh)              # (Dm,)
    wq = params['wq'] * scale[:, None]
    bq = params['bq'] * scale
    wk = params['wk'] * scale[:, None]
    bk = params['bk'] * scale

    # fused QKV projection: x is read from HBM once, lane dim = 3*Dm
    w_qkv = jnp.concatenate([wq, wk, params['wv']], axis=0)      # (3Dm, Dm)
    b_qkv = jnp.concatenate([bq, bk, params['bv']], axis=0)      # (3Dm,)

    # single small transpose so everything downstream stays batch-major
    xb = jnp.transpose(x, (1, 0, 2)).reshape(B * S, Dm)          # (B*S, Dm)
    qkv = pallas_linear(xb, w_qkv, b_qkv, row_tile=row_tile)     # (B*S, 3Dm)
    qkv = qkv.reshape(B, S, 3 * Dm)                              # free reshape

    Tq = _choose_seq_tile(S, seq_tile)
    mask = jnp.tril(jnp.ones((Tq, Tq), jnp.float32))             # s <= t within tile

    attn = pl.pallas_call(
        functools.partial(_ortho_attn_kernel, n_heads=H, d_head=Dh, d_model=Dm),
        out_shape=jax.ShapeDtypeStruct((B, S, Dm), x.dtype),
        grid_spec=pltpu.PrefetchScalarGridSpec(
            num_scalar_prefetch=0,
            grid=(B, S // Tq),
            in_specs=[pl.BlockSpec((Tq, Tq), lambda b, i: (0, 0)),          # resident mask
                      pl.BlockSpec((1, Tq, 3 * Dm), lambda b, i: (b, i, 0))],
            out_specs=pl.BlockSpec((1, Tq, Dm), lambda b, i: (b, i, 0)),
            scratch_shapes=[pltpu.VMEM((H, Dh, Dh), jnp.float32),
                            pltpu.VMEM((H, 1, Dh), jnp.float32)]),
        compiler_params=pltpu.CompilerParams(
            dimension_semantics=("parallel", "arbitrary")),
    )(mask, qkv)

    out = pallas_linear(attn.reshape(B * S, Dm), params['wo'], params['bo'],
                        row_tile=row_tile)
    return out.reshape(B, S, Dm)


# ---------------------------- pure-JAX reference -----------------------------

def reference(x, params, n_heads):
    """Direct transcription of the PyTorch forward (batch_first=False, causal=True)."""
    S, B, Dm = x.shape
    H, Dh = n_heads, Dm // n_heads
    lin = lambda t, w, b: t @ w.T + b
    q = lin(x, params['wq'], params['bq'])
    k = lin(x, params['wk'], params['bk'])
    v = lin(x, params['wv'], params['bv'])

    def heads(t):                                # 's b (h d) -> b h s d'
        return t.reshape(S, B, H, Dh).transpose(1, 2, 0, 3)

    q, k, v = heads(q), heads(k), heads(v)
    beta = jnp.exp(params['beta']).reshape(1, H, 1, 1)
    q = (q * beta).reshape(B * H, S, Dh)
    k = (k * beta).reshape(B * H, S, Dh)
    v = v.reshape(B * H, S, Dh)
    q = jax.nn.softmax(q, axis=-1)
    k = jax.nn.softmax(k, axis=-1)

    kv = jnp.cumsum(k[..., :, None] * v[..., None, :], axis=1)   # (BH, S, Dh, Dh)
    kn = jnp.cumsum(k, axis=1)                                   # (BH, S, Dh)
    num = jnp.einsum('zsd,zsde->zse', q, kv)
    den = jnp.einsum('zsd,zsd->zs', q, kn)[..., None]
    out = num / den
    out = out.reshape(B, H, S, Dh).transpose(0, 2, 1, 3).reshape(B, S, Dm)
    return out @ params['wo'].T + params['bo']                   # (B, S, Dm)


# ----------------------------------- main -------------------------------------

def xavier_uniform(key, shape):
    fan_out, fan_in = shape
    limit = math.sqrt(6.0 / (fan_in + fan_out))
    return jax.random.uniform(key, shape, jnp.float32, -limit, limit)


if __name__ == "__main__":
    S, B, Dm, H = 16, 2, 64, 4            # seq, batch, d_model, heads  (d_head = 16)

    key = jax.random.PRNGKey(0)
    ks = jax.random.split(key, 10)
    params = {
        'beta': 0.1 * jax.random.normal(ks[0], (H,), jnp.float32),
        'wq': xavier_uniform(ks[1], (Dm, Dm)),
        'bq': 0.02 * jax.random.normal(ks[2], (Dm,), jnp.float32),
        'wk': xavier_uniform(ks[3], (Dm, Dm)),
        'bk': 0.02 * jax.random.normal(ks[4], (Dm,), jnp.float32),
        'wv': xavier_uniform(ks[5], (Dm, Dm)),
        'bv': 0.02 * jax.random.normal(ks[6], (Dm,), jnp.float32),
        'wo': xavier_uniform(ks[7], (Dm, Dm)),
        'bo': 0.02 * jax.random.normal(ks[8], (Dm,), jnp.float32),
    }
    x = jax.random.normal(ks[9], (S, B, Dm), jnp.float32)   # (seq, batch, d_model)

    out = jax.block_until_ready(ortho_linear_attention(x, params, H))
    ref = reference(x, params, H)

    assert out.shape == (B, S, Dm)
    err = float(jnp.max(jnp.abs(out - ref)))
    assert jnp.allclose(out, ref, atol=2e-4, rtol=2e-4), f"max abs err {err}"
    print("KERNEL_OK")
</pallas_src>

<mosaic_0001>
module attributes {stable_mosaic.version = 11 : i64} {
  func.func @_linear_kernel(%arg0: i32, %arg1: memref<32x64xf32, #tpu.memory_space<vmem>>, %arg2: memref<64x192xf32, #tpu.memory_space<vmem>>, %arg3: memref<1x192xf32, #tpu.memory_space<vmem>>, %arg4: memref<32x192xf32, #tpu.memory_space<vmem>>) attributes {dimension_semantics = [#tpu.dimension_semantics<parallel>], iteration_bounds = array<i64: 1>, scalar_prefetch = 0 : i64, scratch_operands = 0 : i64, tpu.core_type = #tpu.core_type<tc>, window_params = [{transform_indices = @transform_0, window_bounds = array<i64: 32, 64>}, {pipeline_mode = #tpu.pipeline_mode<synchronous>, transform_indices = @transform_1, window_bounds = array<i64: 64, 192>}, {pipeline_mode = #tpu.pipeline_mode<synchronous>, transform_indices = @transform_2, window_bounds = array<i64: 1, 192>}, {transform_indices = @transform_3, window_bounds = array<i64: 32, 192>}]} {
    %c0 = arith.constant 0 : index
    %c0_0 = arith.constant 0 : index
    %0 = vector.load %arg1[%c0, %c0_0] : memref<32x64xf32, #tpu.memory_space<vmem>>, vector<32x64xf32>
    %c0_1 = arith.constant 0 : index
    %c0_2 = arith.constant 0 : index
    %1 = vector.load %arg2[%c0_1, %c0_2] : memref<64x192xf32, #tpu.memory_space<vmem>>, vector<64x192xf32>
    %cst = arith.constant dense<0.000000e+00> : vector<32x192xf32>
    %2 = tpu.matmul %0, %1, %cst {dimension_numbers = #tpu.dot_dimension_numbers<[1], [0], [0], [1], [0, 0, 1, 1], [], []>} : vector<32x64xf32>, vector<64x192xf32>, vector<32x192xf32> -> vector<32x192xf32>
    %c0_3 = arith.constant 0 : index
    %c0_4 = arith.constant 0 : index
    %3 = vector.load %arg3[%c0_3, %c0_4] : memref<1x192xf32, #tpu.memory_space<vmem>>, vector<1x192xf32>
    %4 = vector.broadcast %3 : vector<1x192xf32> to vector<32x192xf32>
    %5 = arith.addf %2, %4 : vector<32x192xf32>
    %c0_5 = arith.constant 0 : index
    %c0_6 = arith.constant 0 : index
    %6 = vector.load %arg4[%c0_5, %c0_6] : memref<32x192xf32, #tpu.memory_space<vmem>>, vector<32x192xf32>
    tpu.vector_store %arg4[%c0_5, %c0_6], %5 {strides = array<i32>} : memref<32x192xf32, #tpu.memory_space<vmem>>, vector<32x192xf32>,
    return
  }
  func.func @transform_0(%arg0: i32) -> (i32, i32) {
    %c0_i32 = arith.constant 0 : i32
    %c0_i32_0 = arith.constant 0 : i32
    return %arg0, %c0_i32 : i32, i32
  }
  func.func @transform_1(%arg0: i32) -> (i32, i32) {
    %c0_i32 = arith.constant 0 : i32
    %c0_i32_0 = arith.constant 0 : i32
    %c0_i32_1 = arith.constant 0 : i32
    return %c0_i32, %c0_i32_0 : i32, i32
  }
  func.func @transform_2(%arg0: i32) -> (i32, i32) {
    %c0_i32 = arith.constant 0 : i32
    %c0_i32_0 = arith.constant 0 : i32
    %c0_i32_1 = arith.constant 0 : i32
    return %c0_i32, %c0_i32_0 : i32, i32
  }
  func.func @transform_3(%arg0: i32) -> (i32, i32) {
    %c0_i32 = arith.constant 0 : i32
    %c0_i32_0 = arith.constant 0 : i32
    return %arg0, %c0_i32 : i32, i32
  }
}

</mosaic_0001>

<llo_original>
// kernel: tpu_custom_call.1
$region0: #{tpu_custom_call.1}
  #allocation0 [shape = 'u32[]', space=smem, size = 0x4, offset = 0x4, fixed_abs, tag = 'smem constant byte address 0x4 - core index']
  #allocation1 [shape = 'u32[72,128]{1,0:T(1,128)}', space=vmem, size = 0x9000, scoped, tag = 'internal scratch']
  %s0 = inlined_call_operand.hbm [shape: f32[32,64], index: 0, kind: input, shape index: {}]
  %s1 = inlined_call_operand.hbm [shape: f32[64,192], index: 1, kind: input, shape index: {}]
  %s2 = inlined_call_operand.hbm [shape: f32[1,192], index: 2, kind: input, shape index: {}]
  %s3 = inlined_call_operand.hbm [shape: f32[32,192], index: 3, kind: output, shape index: {}]
  %s4 = sld [smem:[#allocation0]]
  $region34: #{tpu_custom_call.1} parent=0
    _
  %s6 = ssub.s32 1, %s4
  %s7 = scalar_select 0, %s6, %s4
  $region1: #{tpu_custom_call.1} parent=0
    #allocation2 [shape = 'u8[16384]{0}', space=vmem, size = 0x4000, scoped, tag = 'input window, operand 0, single buffered']
    #allocation3 [shape = 's32[1]{0}', space=sflag, size = 0x4, scoped, tag = 'scoped memory for tpu_custom_call.1']
    #allocation4 [shape = 's32[1]{0}', space=sflag, size = 0x4, scoped, tag = 'scoped memory for tpu_custom_call.1']
    #allocation5 [shape = 'u8[65536]{0}', space=vmem, size = 0x10000, scoped, tag = 'input window, operand 1, single buffered']
    #allocation6 [shape = 's32[1]{0}', space=sflag, size = 0x4, scoped, tag = 'scoped memory for tpu_custom_call.1']
    #allocation7 [shape = 'u8[1024]{0}', space=vmem, size = 0x400, scoped, tag = 'input window, operand 2, single buffered']
    #allocation8 [shape = 'u8[32768]{0}', space=vmem, size = 0x8000, scoped, tag = 'output window, operand 0, single buffered']
    %8 = vsyncpa [#allocation3], 0
    %9 = vsyncpa [#allocation6], 0
    %10 = vsyncpa [#allocation4], 0
    // Predicated region
    $region2: #{tpu_custom_call.1} parent=1 // pred_check
      _
    $region3: #{tpu_custom_call.1} parent=1 // pred_check_branch
      %12 = sbr.rel (0) target = $region5
    $region4: #{tpu_custom_call.1} parent=1 // pred_region
      %14 = vsyncadd [#allocation3], 0
      %s15 = sshll.u32 %s0, 4
      %s16 = int_to_ptr.hbm [resolvable:$true] %s15
      %s17 = sshll.u32 [#allocation2], 4
      %s18 = int_to_ptr.vmem [resolvable:$true] %s17
      %23 = dma.hbm_to_vmem [thread:$0]  %s16, 512, %s18, [#allocation3], 128, 128, 8
    $region5: #{tpu_custom_call.1} parent=1 // pred_fallthru
      _
    // Predicated region
    $region6: #{tpu_custom_call.1} parent=1 // pred_check
      _
    $region7: #{tpu_custom_call.1} parent=1 // pred_check_branch
      %25 = sbr.rel (0) target = $region9
    $region8: #{tpu_custom_call.1} parent=1 // pred_region
      %27 = vsyncadd [#allocation6], 0
      %s28 = sshll.u32 %s1, 4
      %s29 = int_to_ptr.hbm [resolvable:$true] %s28
      %s30 = sshll.u32 [#allocation5], 4
      %s31 = int_to_ptr.vmem [resolvable:$true] %s30
      %36 = dma.hbm_to_vmem [thread:$0]  %s29, 2048, %s31, [#allocation6], 256, 256, 16
    $region9: #{tpu_custom_call.1} parent=1 // pred_fallthru
      _
    // Predicated region
    $region10: #{tpu_custom_call.1} parent=1 // pred_check
      _
    $region11: #{tpu_custom_call.1} parent=1 // pred_check_branch
      %38 = sbr.rel (0) target = $region13
    $region12: #{tpu_custom_call.1} parent=1 // pred_region
      %40 = vsyncadd [#allocation6], 0
      %s42 = sshll.u32 %s2, 4
      %s43 = int_to_ptr.hbm [resolvable:$true] %s42
      %s44 = sshll.u32 [#allocation7], 4
      %s45 = int_to_ptr.vmem [resolvable:$true] %s44
      %47 = dma.hbm_to_vmem [thread:$0]  %s43, 32, %s45, [#allocation6]
    $region13: #{tpu_custom_call.1} parent=1 // pred_fallthru
      _
    // Predicated region
    $region14: #{tpu_custom_call.1} parent=1 // pred_check
      _
    $region15: #{tpu_custom_call.1} parent=1 // pred_check_branch
      %49 = sbr.rel (0) target = $region17
    $region16: #{tpu_custom_call.1} parent=1 // pred_region
      %51 = dma.done [#allocation3], 512
    $region17: #{tpu_custom_call.1} parent=1 // pred_fallthru
      _
    // Predicated region
    $region18: #{tpu_custom_call.1} parent=1 // pred_check
      _
    $region19: #{tpu_custom_call.1} parent=1 // pred_check_branch
      %53 = sbr.rel (0) target = $region21
    $region20: #{tpu_custom_call.1} parent=1 // pred_region
      %55 = dma.done [#allocation6], 2048
    $region21: #{tpu_custom_call.1} parent=1 // pred_fallthru
      _
    // Predicated region
    $region22: #{tpu_custom_call.1} parent=1 // pred_check
      _
    $region23: #{tpu_custom_call.1} parent=1 // pred_check_branch
      %57 = sbr.rel (0) target = $region25
    $region24: #{tpu_custom_call.1} parent=1 // pred_region
      %59 = dma.done [#allocation6], 32
    $region25: #{tpu_custom_call.1} parent=1 // pred_fallthru
      _
    %v60 = vld [vmem:[#allocation2] sm:$0xff]
    %v61 = vld [vmem:[#allocation2 + $0x8] sm:$0xff]
    %v62 = vld [vmem:[#allocation2 + $0x10] sm:$0xff]
    %v63 = vld [vmem:[#allocation2 + $0x18] sm:$0xff]
    %v64 = vld [vmem:[#allocation5] sm:$0xff]
    %v65 = vld [vmem:[#allocation5 + $0x8] sm:$0xff]
    %v66 = vld [vmem:[#allocation5 + $0x10] sm:$0xff]
    %v67 = vld [vmem:[#allocation5 + $0x18] sm:$0xff]
    %v68 = vld [vmem:[#allocation5 + $0x20] sm:$0xff]
    %v69 = vld [vmem:[#allocation5 + $0x28] sm:$0xff]
    %v70 = vld [vmem:[#allocation5 + $0x30] sm:$0xff]
    %v71 = vld [vmem:[#allocation5 + $0x38] sm:$0xff]
    %v72 = vld [vmem:[#allocation5 + $0x40] sm:$0xff]
    %v73 = vld [vmem:[#allocation5 + $0x48] sm:$0xff]
    %v74 = vld [vmem:[#allocation5 + $0x50] sm:$0xff]
    %v75 = vld [vmem:[#allocation5 + $0x58] sm:$0xff]
    %v76 = vld [vmem:[#allocation5 + $0x60] sm:$0xff]
    %v77 = vld [vmem:[#allocation5 + $0x68] sm:$0xff]
    %v78 = vld [vmem:[#allocation5 + $0x70] sm:$0xff]
    %v79 = vld [vmem:[#allocation5 + $0x78] sm:$0xff]
    %v80 = vld [vmem:[#allocation7] sm:$0x3]
    %v82 = vperm.slane %v80, 0
    %v83 = vperm.slane %v80, 1
    %vm86 = vcmask 523264
    %v88 = vsel %vm86, %v60, 0
    %v91 = vsel %vm86, %v61, 0
    %v94 = vsel %vm86, %v62, 0
    %v97 = vsel %vm86, %v63, 0
    %99 = vmatpush.msra.mxu0 0.0
    %100 = vmatpush.msra.mxu0 0.0
    %101 = vmatpush.msra.mxu0 0.0
    %102 = vmatpush.msra.mxu0 0.0
    %103 = vmatpush.msra.mxu0 0.0
    %104 = vmatpush.msra.mxu0 0.0
    %105 = vmatpush.msra.mxu0 0.0
    %106 = vmatpush.msra.mxu0 0.0
    %107 = vmatpush.msra.mxu0 %v78
    %108 = vmatpush.msra.mxu0 %v76
    %109 = vmatpush.msra.mxu0 %v74
    %110 = vmatpush.msra.mxu0 %v72
    %111 = vmatpush.msra.mxu0 %v70
    %112 = vmatpush.msra.mxu0 %v68
    %113 = vmatpush.msra.mxu0 %v66
    %114 = vmatpush.msra.mxu0 %v64
    %115 = vmatmul.f32.gmra.mxu0 %v88
    %v116 = vpop.f32.mrf.mxu0
    %v117 = vadd.f32 %v82, %v116
    %118 = vmatmul.f32.gmra.mxu0 %v91
    %v119 = vpop.f32.mrf.mxu0
    %v120 = vadd.f32 %v82, %v119
    %121 = vmatmul.f32.gmra.mxu0 %v94
    %v122 = vpop.f32.mrf.mxu0
    %v123 = vadd.f32 %v82, %v122
    %124 = vmatmul.f32.gmra.mxu0 %v97
    %v125 = vpop.f32.mrf.mxu0
    %v126 = vadd.f32 %v82, %v125
    %127 = vdwg.mxu0
    %128 = vmatpush.msra.mxu0 0.0
    %129 = vmatpush.msra.mxu0 0.0
    %130 = vmatpush.msra.mxu0 0.0
    %131 = vmatpush.msra.mxu0 0.0
    %132 = vmatpush.msra.mxu0 0.0
    %133 = vmatpush.msra.mxu0 0.0
    %134 = vmatpush.msra.mxu0 0.0
    %135 = vmatpush.msra.mxu0 0.0
    %136 = vmatpush.msra.mxu0 %v79
    %137 = vmatpush.msra.mxu0 %v77
    %138 = vmatpush.msra.mxu0 %v75
    %139 = vmatpush.msra.mxu0 %v73
    %140 = vmatpush.msra.mxu0 %v71
    %141 = vmatpush.msra.mxu0 %v69
    %142 = vmatpush.msra.mxu0 %v67
    %143 = vmatpush.msra.mxu0 %v65
    %144 = vmatmul.f32.gmra.mxu0 %v88
    %v145 = vpop.f32.mrf.mxu0
    %v146 = vadd.f32 %v83, %v145
    %147 = vmatmul.f32.gmra.mxu0 %v91
    %v148 = vpop.f32.mrf.mxu0
    %v149 = vadd.f32 %v83, %v148
    %150 = vmatmul.f32.gmra.mxu0 %v94
    %v151 = vpop.f32.mrf.mxu0
    %v152 = vadd.f32 %v83, %v151
    %153 = vmatmul.f32.gmra.mxu0 %v97
    %v154 = vpop.f32.mrf.mxu0
    %v155 = vadd.f32 %v83, %v154
    %156 = vdwg.mxu0
    %157 = vst [vmem:[#allocation8] sm:$0xff] %v117
    %158 = vst.msk [vmem:[#allocation8 + $0x8] sm:$0xff] %vm86, %v146
    %159 = vst [vmem:[#allocation8 + $0x10] sm:$0xff] %v120
    %160 = vst.msk [vmem:[#allocation8 + $0x18] sm:$0xff] %vm86, %v149
    %161 = vst [vmem:[#allocation8 + $0x20] sm:$0xff] %v123
    %162 = vst.msk [vmem:[#allocation8 + $0x28] sm:$0xff] %vm86, %v152
    %163 = vst [vmem:[#allocation8 + $0x30] sm:$0xff] %v126
    %164 = vst.msk [vmem:[#allocation8 + $0x38] sm:$0xff] %vm86, %v155
    // Predicated region
    $region26: #{tpu_custom_call.1} parent=1 // pred_check
      _
    $region27: #{tpu_custom_call.1} parent=1 // pred_check_branch
      %166 = sbr.rel (0) target = $region29
    $region28: #{tpu_custom_call.1} parent=1 // pred_region
      %168 = vsyncadd [#allocation4], 0
      %s169 = sshll.u32 [#allocation8], 4
      %s170 = int_to_ptr.vmem [resolvable:$true] %s169
      %s171 = sshll.u32 %s3, 4
      %s172 = int_to_ptr.hbm [resolvable:$true] %s171
      %177 = dma.vmem_to_hbm [thread:$0]  %s170, 1024, %s172, [#allocation4], 256, 256, 16
    $region29: #{tpu_custom_call.1} parent=1 // pred_fallthru
      _
    // Predicated region
    $region30: #{tpu_custom_call.1} parent=1 // pred_check
      _
    $region31: #{tpu_custom_call.1} parent=1 // pred_check_branch
      %179 = sbr.rel (0) target = $region33
    $region32: #{tpu_custom_call.1} parent=1 // pred_region
      %181 = dma.done [#allocation4], 1024
    $region33: #{tpu_custom_call.1} parent=1 // pred_fallthru
      _
    %182 = vsyncpa [#allocation3], 1
    %183 = vsyncpa [#allocation6], 1
    %184 = vsyncpa [#allocation4], 1

</llo_original>
